<compile_context>
chip_gen: v6e
topology: v6e:2x2x1
jax: 0.10.0
libtpu: 0.0.40
codegen_flags: <defaults>
</compile_context>

<pallas_src>
import functools

import jax
import jax.numpy as jnp
from jax.experimental import pallas as pl
from jax.experimental.pallas import tpu as pltpu


def _fourier_features_kernel(x_ref, o_ref, *, orders, C):
    """x_ref: (TM, C);  o_ref: (TM, (1 + 2*len(orders)) * C)."""
    # Compute in f32 regardless of storage dtype (v5e VPU/EUP have no bf16 path).
    x = x_ref[...].astype(jnp.float32)

    # sin/cos per order.  For non-negative integer orders, evaluate sin/cos
    # only at the smallest scale (largest order) and derive the rest via
    # double-angle identities; otherwise fall back to direct evaluation.
    trig = {}
    if all(isinstance(o, int) and o >= 0 for o in orders):
        max_o, min_o = max(orders), min(orders)
        base = x * (1.0 / (2.0 ** max_o))
        s, c = jnp.sin(base), jnp.cos(base)
        trig[max_o] = (s, c)
        for o in range(max_o - 1, min_o - 1, -1):
            # RHS evaluated before assignment -> both use the previous (s, c).
            s, c = 2.0 * s * c, 1.0 - 2.0 * s * s    # sin(2t), cos(2t)
            trig[o] = (s, c)
    else:
        for o in set(orders):
            scaled = x * (1.0 / (2.0 ** o))
            trig[o] = (jnp.sin(scaled), jnp.cos(scaled))

    feats = [x]
    for o in orders:
        s, c = trig[o]
        feats.append(s)
        feats.append(c)

    if C % 128 == 0:
        # Lane-aligned feature chunks: per-slice stores are already unmasked.
        for idx, f in enumerate(feats):
            o_ref[:, idx * C:(idx + 1) * C] = f.astype(o_ref.dtype)
    else:
        # Narrow C (e.g. 32 lanes): build the full lane-dense tile once and
        # issue a single wide store instead of several masked partial stores.
        o_ref[...] = jnp.concatenate(feats, axis=-1).astype(o_ref.dtype)


def _pick_row_tile(R, C, n_feat, itemsize, target_step_bytes=4 * 1024 * 1024):
    """Row tile sized by HBM traffic per step; sublane-aligned; >=2 steps for big R."""
    bytes_per_row = (1 + n_feat) * C * itemsize      # input + output traffic per row
    tm = max(8, target_step_bytes // bytes_per_row)
    if R > 1024:
        # Guarantee at least 2 grid steps so the parallel axis uses both v7x TCs.
        tm = min(tm, pl.cdiv(R, 2))
    if tm >= R:
        return R                                     # single step, full-extent block
    return max(8, (tm // 8) * 8)                     # multiple of 8 (sublane)


def fourier_features(x, orders=(1, 2)):
    """x: (..., C) float array.  Returns (..., (1 + 2*len(orders)) * C)."""
    orders = tuple(orders)
    orig_shape = x.shape
    C = orig_shape[-1]
    R = 1
    for d in orig_shape[:-1]:
        R *= d
    x2 = x.reshape(R, C)

    n_feat = 1 + 2 * len(orders)
    itemsize = jnp.dtype(x.dtype).itemsize
    tm = _pick_row_tile(R, C, n_feat, itemsize)
    grid = (pl.cdiv(R, tm),)

    kernel = functools.partial(_fourier_features_kernel, orders=orders, C=C)

    cost = pl.CostEstimate(
        flops=R * C * (1 + 3 * len(orders)),          # scale mul + double-angle arith
        transcendentals=2 * R * C,                    # one sin + one cos per element
        bytes_accessed=(1 + n_feat) * R * C * itemsize,
    )

    out2 = pl.pallas_call(
        kernel,
        out_shape=jax.ShapeDtypeStruct((R, n_feat * C), x.dtype),
        grid_spec=pltpu.PrefetchScalarGridSpec(
            num_scalar_prefetch=0,
            grid=grid,
            in_specs=[pl.BlockSpec((tm, C), lambda i: (i, 0))],
            out_specs=pl.BlockSpec((tm, n_feat * C), lambda i: (i, 0)),
        ),
        compiler_params=pltpu.CompilerParams(
            dimension_semantics=("parallel",),        # shards row steps across v7x TCs
            vmem_limit_bytes=32 * 1024 * 1024,        # safe on v5e/v6e/v7x
        ),
        cost_estimate=cost,
    )(x2)

    return out2.reshape(orig_shape[:-1] + (n_feat * C,))


def _reference(x, orders=(1, 2)):
    # Pure-JAX mirror of the PyTorch forward.
    feats = []
    for o in orders:
        feats.append(jnp.sin(x / 2 ** o))
        feats.append(jnp.cos(x / 2 ** o))
    return jnp.concatenate([x] + feats, axis=-1)


if __name__ == "__main__":
    orders = (1, 2)

    # Small shape consistent with the module's usage: (batch, nodes, channels).
    B, N, C = 2, 16, 32
    x = jax.random.normal(jax.random.PRNGKey(0), (B, N, C), dtype=jnp.float32)

    out = jax.block_until_ready(fourier_features(x, orders))
    ref = _reference(x, orders)
    assert out.shape == (B, N, (1 + 2 * len(orders)) * C)
    assert jnp.allclose(out, ref, atol=1e-4, rtol=1e-4), "mismatch vs reference (small)"

    # Modest larger row count: exercises the multi-step tiled grid path,
    # including a ragged tail block and the >=2-step megacore split.
    x_big = jax.random.normal(jax.random.PRNGKey(1), (16384, C), dtype=jnp.float32)
    out_big = jax.block_until_ready(fourier_features(x_big, orders))
    ref_big = _reference(x_big, orders)
    assert out_big.shape == (16384, (1 + 2 * len(orders)) * C)
    assert jnp.allclose(out_big, ref_big, atol=1e-4, rtol=1e-4), "mismatch vs reference (tiled)"

    print("KERNEL_OK")
</pallas_src>

<mosaic_0001>
module attributes {stable_mosaic.version = 11 : i64} {
  func.func @_fourier_features_kernel(%arg0: i32, %arg1: memref<32x32xf32, #tpu.memory_space<vmem>>, %arg2: memref<32x160xf32, #tpu.memory_space<vmem>>) attributes {dimension_semantics = [#tpu.dimension_semantics<parallel>], iteration_bounds = array<i64: 1>, scalar_prefetch = 0 : i64, scratch_operands = 0 : i64, tpu.core_type = #tpu.core_type<tc>, window_params = [{transform_indices = @transform_0, window_bounds = array<i64: 32, 32>}, {transform_indices = @transform_1, window_bounds = array<i64: 32, 160>}]} {
    %c0 = arith.constant 0 : index
    %c0_0 = arith.constant 0 : index
    %0 = vector.load %arg1[%c0, %c0_0] : memref<32x32xf32, #tpu.memory_space<vmem>>, vector<32x32xf32>
    %cst = arith.constant 2.500000e-01 : f32
    %1 = vector.broadcast %cst : f32 to vector<32x32xf32>
    %2 = arith.mulf %0, %1 : vector<32x32xf32>
    %3 = math.sin %2 : vector<32x32xf32>
    %4 = math.cos %2 : vector<32x32xf32>
    %cst_1 = arith.constant 2.000000e+00 : f32
    %5 = vector.broadcast %cst_1 : f32 to vector<32x32xf32>
    %6 = arith.mulf %5, %3 : vector<32x32xf32>
    %7 = arith.mulf %6, %4 : vector<32x32xf32>
    %cst_2 = arith.constant 2.000000e+00 : f32
    %8 = vector.broadcast %cst_2 : f32 to vector<32x32xf32>
    %9 = arith.mulf %8, %3 : vector<32x32xf32>
    %10 = arith.mulf %9, %3 : vector<32x32xf32>
    %cst_3 = arith.constant 1.000000e+00 : f32
    %11 = vector.broadcast %cst_3 : f32 to vector<32x32xf32>
    %12 = arith.subf %11, %10 : vector<32x32xf32>
    %13 = tpu.concatenate %0, %7, %12, %3, %4 in 1 : vector<32x32xf32>, vector<32x32xf32>, vector<32x32xf32>, vector<32x32xf32>, vector<32x32xf32> -> vector<32x160xf32>
    %c0_4 = arith.constant 0 : index
    %c0_5 = arith.constant 0 : index
    %14 = vector.load %arg2[%c0_4, %c0_5] : memref<32x160xf32, #tpu.memory_space<vmem>>, vector<32x160xf32>
    tpu.vector_store %arg2[%c0_4, %c0_5], %13 {strides = array<i32>} : memref<32x160xf32, #tpu.memory_space<vmem>>, vector<32x160xf32>,
    return
  }
  func.func @transform_0(%arg0: i32) -> (i32, i32) {
    %c0_i32 = arith.constant 0 : i32
    %c0_i32_0 = arith.constant 0 : i32
    return %arg0, %c0_i32 : i32, i32
  }
  func.func @transform_1(%arg0: i32) -> (i32, i32) {
    %c0_i32 = arith.constant 0 : i32
    %c0_i32_0 = arith.constant 0 : i32
    return %arg0, %c0_i32 : i32, i32
  }
}

</mosaic_0001>

<llo_original>
// kernel: tpu_custom_call.1
$region0: #{tpu_custom_call.1}
  #allocation0 [shape = 'u32[]', space=smem, size = 0x4, offset = 0x4, fixed_abs, tag = 'smem constant byte address 0x4 - core index']
  #allocation1 [shape = 'u32[144,128]{1,0:T(1,128)}', space=vmem, size = 0x12000, scoped, tag = 'internal scratch']
  %s0 = inlined_call_operand.hbm [shape: f32[32,32], index: 0, kind: input, shape index: {}]
  %s1 = inlined_call_operand.hbm [shape: f32[32,160], index: 1, kind: output, shape index: {}]
  %s2 = sld [smem:[#allocation0]]
  $region18: #{tpu_custom_call.1} parent=0
    _
  %s4 = ssub.s32 1, %s2
  %s5 = scalar_select 0, %s4, %s2
  $region1: #{tpu_custom_call.1} parent=0
    #allocation2 [shape = 'u8[16384]{0}', space=vmem, size = 0x4000, scoped, tag = 'input window, operand 0, single buffered']
    #allocation3 [shape = 's32[1]{0}', space=sflag, size = 0x4, scoped, tag = 'scoped memory for tpu_custom_call.1']
    #allocation4 [shape = 's32[1]{0}', space=sflag, size = 0x4, scoped, tag = 'scoped memory for tpu_custom_call.1']
    #allocation5 [shape = 'u8[32768]{0}', space=vmem, size = 0x8000, scoped, tag = 'output window, operand 0, single buffered']
    %6 = vsyncpa [#allocation3], 0
    %7 = vsyncpa [#allocation4], 0
    // Predicated region
    $region2: #{tpu_custom_call.1} parent=1 // pred_check
      _
    $region3: #{tpu_custom_call.1} parent=1 // pred_check_branch
      %9 = sbr.rel (0) target = $region5
    $region4: #{tpu_custom_call.1} parent=1 // pred_region
      %s11 = ssub.s32 512, 512
      %12 = vsyncadd [#allocation3], %s11
      %s13 = sshll.u32 [#allocation2], 4
      %s14 = int_to_ptr.vmem [resolvable:$true] %s13
      %19 = dma.hbm_to_vmem [thread:$0]  %s0, 512, %s14, [#allocation3], 128, 128, 8
    $region5: #{tpu_custom_call.1} parent=1 // pred_fallthru
      _
    // Predicated region
    $region6: #{tpu_custom_call.1} parent=1 // pred_check
      _
    $region7: #{tpu_custom_call.1} parent=1 // pred_check_branch
      %21 = sbr.rel (0) target = $region9
    $region8: #{tpu_custom_call.1} parent=1 // pred_region
      %22 = dma.done [#allocation3], 512
    $region9: #{tpu_custom_call.1} parent=1 // pred_fallthru
      _
    %v23 = vld [vmem:[#allocation2] sm:$0xff]
    %v24 = vld [vmem:[#allocation2 + $0x8] sm:$0xff]
    %v25 = vld [vmem:[#allocation2 + $0x10] sm:$0xff]
    %v26 = vld [vmem:[#allocation2 + $0x18] sm:$0xff]
    %v27 = vmul.f32 %v23, 0.25
    %v28 = vmul.f32 %v24, 0.25
    %v29 = vmul.f32 %v25, 0.25
    %v30 = vmul.f32 %v26, 0.25
    %v31 = vand.u32 2147483647, %v27
    %vm32 = vcmp.le.f32.partialorder %v31, 0.7853982
    %vm33 = vcmp.lt.s32.totalorder %v27, 0
    %v34 = vand.u32 %v27, 2139095040
    %v35 = vshrl.u32 %v34, 23
    %v36 = vsub.s32 %v35, 127
    %v37 = vand.u32 2147483647, %v27
    %v38 = vand.u32 %v37, 8388607
    %v39 = vor.u32 %v38, 8388608
    %v40 = vsub.s32 0, %v39
    %v41 = vadd.s32 %v36, 1
    %vm42 = vcmp.gt.s32.totalorder %v41, 0
    %v43 = vsel %vm42, %v41, 0
    %v44 = vshrl.u32 %v43, 5
    %v45 = vand.u32 %v43, 31
    %v46 = vsub.s32 32, %v45
    %v47 = vshrl.u32 683565275, %v46
    %v48 = vshll.u32 683565275, %v45
    %v49 = vshrl.u32 2475754826, %v46
    %v50 = vor.u32 %v48, %v49
    %v51 = vshll.u32 2475754826, %v45
    %v52 = vshrl.u32 2131351028, %v46
    %v53 = vor.u32 %v51, %v52
    %v54 = vshll.u32 2131351028, %v45
    %v55 = vshrl.u32 2102212464, %v46
    %v56 = vor.u32 %v54, %v55
    %v57 = vshll.u32 2102212464, %v45
    %v58 = vshrl.u32 920167782, %v46
    %v59 = vor.u32 %v57, %v58
    %v60 = vshll.u32 920167782, %v45
    %v61 = vshrl.u32 1326507024, %v46
    %v62 = vor.u32 %v60, %v61
    %vm63 = vcmp.lt.s32.totalorder %v44, 1
    %vm64 = vcmp.lt.s32.totalorder %v44, 2
    %vm65 = vcmp.lt.s32.totalorder %v44, 3
    %vm66 = vcmp.lt.s32.totalorder %v44, 4
    %v67 = vsel %vm63, %v47, %v50
    %v68 = vsel %vm66, %v56, 2102212464
    %v69 = vsel %vm65, %v53, %v68
    %v70 = vsel %vm64, %v67, %v69
    %v71 = vsel %vm63, %v50, %v53
    %v72 = vsel %vm66, %v59, 920167782
    %v73 = vsel %vm65, %v56, %v72
    %v74 = vsel %vm64, %v71, %v73
    %v75 = vsel %vm63, %v53, %v56
    %v76 = vsel %vm66, %v62, 1326507024
    %v77 = vsel %vm65, %v59, %v76
    %v78 = vsel %vm64, %v75, %v77
    %v79 = vshll.u32 %v39, 8
    %v80 = vmul.u32.u64.compose %v79, %v78
    %v81 = vextract.low.u32 %v80
    %v82 = vextract.high.u32 %v80
    %v83 = vmul.u32.u64.compose %v79, %v74
    %v84 = vextract.low.u32 %v83
    %v85 = vextract.high.u32 %v83
    %v86 = vmul.u32 %v79, %v70
    %v87 = vadd.s32 %v82, %v84
    %vm88 = vc.u32 %v82, %v84
    %v89 = vadd.s32 %v85, 1
    %v90 = vsel %vm88, %v89, %v85
    %v91 = vadd.s32 %v86, %v90
    %v92 = vadd.s32 %v91, 536870912
    %v93 = vshrl.u32 %v92, 30
    %v94 = vshll.u32 %v93, 30
    %v95 = vsub.s32 %v91, %v94
    %vm96 = vcmp.lt.s32.totalorder %v95, 0
    %v97 = vsub.s32 0, %v95
    %v98 = vsel %vm96, %v97, %v95
    %v99 = vclz %v98
    %v100 = vsub.s32 %v99, 2
    %vm101 = vcmp.gt.s32.totalorder 0, %v100
    %v102 = vsel %vm101, 0, %v100
    %v103 = vsub.s32 32, %v102
    %v104 = vshll.u32 %v95, %v102
    %v105 = vshrl.u32 %v87, %v103
    %v106 = vor.u32 %v104, %v105
    %v107 = vsub.s32 4294967266, %v102
    %v108 = vadd.s32 %v107, 127
    %v109 = vshll.u32 %v108, 23
    %v110 = vor.u32 4788187, %v109
    %v111 = vand.u32 2147483647, %v110
    %v113 = vcvt.s32.f32 %v106
    %v114 = vmul.f32 %v113, %v111
    %v115 = vxor.u32 %v114, 2147483648
    %v116 = vsel %vm33, %v115, %v114
    %v117 = vsub.s32 4, %v93
    %v118 = vsel %vm33, %v117, %v93
    %v119 = vsel %vm32, %v27, %v116
    %v120 = vsel %vm32, 0, %v118
    %v121 = vcosq.f32.pop %v119
    %v122 = vsinq.f32.pop %v119
    %vm123 = vweird.f32 %v27
    %v124 = vadd.s32 %v120, 3
    %v125 = vand.u32 %v124, 3
    %vm126 = vcmp.lt.s32.totalorder %v125, 2
    %vm127 = vcmp.eq.s32.totalorder %v125, 0
    %v128 = vxor.u32 %v122, 2147483648
    %v129 = vsel %vm127, %v121, %v128
    %vm130 = vcmp.eq.s32.totalorder %v125, 2
    %v131 = vxor.u32 %v121, 2147483648
    %v132 = vsel %vm130, %v131, %v122
    %v133 = vsel %vm126, %v129, %v132
    %v134 = vsel %vm123, nan, %v133
    %v135 = vand.u32 2147483647, %v28
    %vm136 = vcmp.le.f32.partialorder %v135, 0.7853982
    %vm137 = vcmp.lt.s32.totalorder %v28, 0
    %v138 = vand.u32 %v28, 2139095040
    %v139 = vshrl.u32 %v138, 23
    %v140 = vsub.s32 %v139, 127
    %v141 = vand.u32 2147483647, %v28
    %v142 = vand.u32 %v141, 8388607
    %v143 = vor.u32 %v142, 8388608
    %v144 = vsub.s32 0, %v143
    %v145 = vadd.s32 %v140, 1
    %vm146 = vcmp.gt.s32.totalorder %v145, 0
    %v147 = vsel %vm146, %v145, 0
    %v148 = vshrl.u32 %v147, 5
    %v149 = vand.u32 %v147, 31
    %v150 = vsub.s32 32, %v149
    %v151 = vshrl.u32 683565275, %v150
    %v152 = vshll.u32 683565275, %v149
    %v153 = vshrl.u32 2475754826, %v150
    %v154 = vor.u32 %v152, %v153
    %v155 = vshll.u32 2475754826, %v149
    %v156 = vshrl.u32 2131351028, %v150
    %v157 = vor.u32 %v155, %v156
    %v158 = vshll.u32 2131351028, %v149
    %v159 = vshrl.u32 2102212464, %v150
    %v160 = vor.u32 %v158, %v159
    %v161 = vshll.u32 2102212464, %v149
    %v162 = vshrl.u32 920167782, %v150
    %v163 = vor.u32 %v161, %v162
    %v164 = vshll.u32 920167782, %v149
    %v165 = vshrl.u32 1326507024, %v150
    %v166 = vor.u32 %v164, %v165
    %vm167 = vcmp.lt.s32.totalorder %v148, 1
    %vm168 = vcmp.lt.s32.totalorder %v148, 2
    %vm169 = vcmp.lt.s32.totalorder %v148, 3
    %vm170 = vcmp.lt.s32.totalorder %v148, 4
    %v171 = vsel %vm167, %v151, %v154
    %v172 = vsel %vm170, %v160, 2102212464
    %v173 = vsel %vm169, %v157, %v172
    %v174 = vsel %vm168, %v171, %v173
    %v175 = vsel %vm167, %v154, %v157
    %v176 = vsel %vm170, %v163, 920167782
    %v177 = vsel %vm169, %v160, %v176
    %v178 = vsel %vm168, %v175, %v177
    %v179 = vsel %vm167, %v157, %v160
    %v180 = vsel %vm170, %v166, 1326507024
    %v181 = vsel %vm169, %v163, %v180
    %v182 = vsel %vm168, %v179, %v181
    %v183 = vshll.u32 %v143, 8
    %v184 = vmul.u32.u64.compose %v183, %v182
    %v185 = vextract.low.u32 %v184
    %v186 = vextract.high.u32 %v184
    %v187 = vmul.u32.u64.compose %v183, %v178
    %v188 = vextract.low.u32 %v187
    %v189 = vextract.high.u32 %v187
    %v190 = vmul.u32 %v183, %v174
    %v191 = vadd.s32 %v186, %v188
    %vm192 = vc.u32 %v186, %v188
    %v193 = vadd.s32 %v189, 1
    %v194 = vsel %vm192, %v193, %v189
    %v195 = vadd.s32 %v190, %v194
    %v196 = vadd.s32 %v195, 536870912
    %v197 = vshrl.u32 %v196, 30
    %v198 = vshll.u32 %v197, 30
    %v199 = vsub.s32 %v195, %v198
    %vm200 = vcmp.lt.s32.totalorder %v199, 0
    %v201 = vsub.s32 0, %v199
    %v202 = vsel %vm200, %v201, %v199
    %v203 = vclz %v202
    %v204 = vsub.s32 %v203, 2
    %vm205 = vcmp.gt.s32.totalorder 0, %v204
    %v206 = vsel %vm205, 0, %v204
    %v207 = vsub.s32 32, %v206
    %v208 = vshll.u32 %v199, %v206
    %v209 = vshrl.u32 %v191, %v207
    %v210 = vor.u32 %v208, %v209
    %v211 = vsub.s32 4294967266, %v206
    %v212 = vadd.s32 %v211, 127
    %v213 = vshll.u32 %v212, 23
    %v214 = vor.u32 4788187, %v213
    %v215 = vand.u32 2147483647, %v214
    %v217 = vcvt.s32.f32 %v210
    %v218 = vmul.f32 %v217, %v215
    %v219 = vxor.u32 %v218, 2147483648
    %v220 = vsel %vm137, %v219, %v218
    %v221 = vsub.s32 4, %v197
    %v222 = vsel %vm137, %v221, %v197
    %v223 = vsel %vm136, %v28, %v220
    %v224 = vsel %vm136, 0, %v222
    %v225 = vcosq.f32.pop %v223
    %v226 = vsinq.f32.pop %v223
    %vm227 = vweird.f32 %v28
    %v228 = vadd.s32 %v224, 3
    %v229 = vand.u32 %v228, 3
    %vm230 = vcmp.lt.s32.totalorder %v229, 2
    %vm231 = vcmp.eq.s32.totalorder %v229, 0
    %v232 = vxor.u32 %v226, 2147483648
    %v233 = vsel %vm231, %v225, %v232
    %vm234 = vcmp.eq.s32.totalorder %v229, 2
    %v235 = vxor.u32 %v225, 2147483648
    %v236 = vsel %vm234, %v235, %v226
    %v237 = vsel %vm230, %v233, %v236
    %v238 = vsel %vm227, nan, %v237
    %v239 = vand.u32 2147483647, %v29
    %vm240 = vcmp.le.f32.partialorder %v239, 0.7853982
    %vm241 = vcmp.lt.s32.totalorder %v29, 0
    %v242 = vand.u32 %v29, 2139095040
    %v243 = vshrl.u32 %v242, 23
    %v244 = vsub.s32 %v243, 127
    %v245 = vand.u32 2147483647, %v29
    %v246 = vand.u32 %v245, 8388607
    %v247 = vor.u32 %v246, 8388608
    %v248 = vsub.s32 0, %v247
    %v249 = vadd.s32 %v244, 1
    %vm250 = vcmp.gt.s32.totalorder %v249, 0
    %v251 = vsel %vm250, %v249, 0
    %v252 = vshrl.u32 %v251, 5
    %v253 = vand.u32 %v251, 31
    %v254 = vsub.s32 32, %v253
    %v255 = vshrl.u32 683565275, %v254
    %v256 = vshll.u32 683565275, %v253
    %v257 = vshrl.u32 2475754826, %v254
    %v258 = vor.u32 %v256, %v257
    %v259 = vshll.u32 2475754826, %v253
    %v260 = vshrl.u32 2131351028, %v254
    %v261 = vor.u32 %v259, %v260
    %v262 = vshll.u32 2131351028, %v253
    %v263 = vshrl.u32 2102212464, %v254
    %v264 = vor.u32 %v262, %v263
    %v265 = vshll.u32 2102212464, %v253
    %v266 = vshrl.u32 920167782, %v254
    %v267 = vor.u32 %v265, %v266
    %v268 = vshll.u32 920167782, %v253
    %v269 = vshrl.u32 1326507024, %v254
    %v270 = vor.u32 %v268, %v269
    %vm271 = vcmp.lt.s32.totalorder %v252, 1
    %vm272 = vcmp.lt.s32.totalorder %v252, 2
    %vm273 = vcmp.lt.s32.totalorder %v252, 3
    %vm274 = vcmp.lt.s32.totalorder %v252, 4
    %v275 = vsel %vm271, %v255, %v258
    %v276 = vsel %vm274, %v264, 2102212464
    %v277 = vsel %vm273, %v261, %v276
    %v278 = vsel %vm272, %v275, %v277
    %v279 = vsel %vm271, %v258, %v261
    %v280 = vsel %vm274, %v267, 920167782
    %v281 = vsel %vm273, %v264, %v280
    %v282 = vsel %vm272, %v279, %v281
    %v283 = vsel %vm271, %v261, %v264
    %v284 = vsel %vm274, %v270, 1326507024
    %v285 = vsel %vm273, %v267, %v284
    %v286 = vsel %vm272, %v283, %v285
    %v287 = vshll.u32 %v247, 8
    %v288 = vmul.u32.u64.compose %v287, %v286
    %v289 = vextract.low.u32 %v288
    %v290 = vextract.high.u32 %v288
    %v291 = vmul.u32.u64.compose %v287, %v282
    %v292 = vextract.low.u32 %v291
    %v293 = vextract.high.u32 %v291
    %v294 = vmul.u32 %v287, %v278
    %v295 = vadd.s32 %v290, %v292
    %vm296 = vc.u32 %v290, %v292
    %v297 = vadd.s32 %v293, 1
    %v298 = vsel %vm296, %v297, %v293
    %v299 = vadd.s32 %v294, %v298
    %v300 = vadd.s32 %v299, 536870912
    %v301 = vshrl.u32 %v300, 30
    %v302 = vshll.u32 %v301, 30
    %v303 = vsub.s32 %v299, %v302
    %vm304 = vcmp.lt.s32.totalorder %v303, 0
    %v305 = vsub.s32 0, %v303
    %v306 = vsel %vm304, %v305, %v303
    %v307 = vclz %v306
    %v308 = vsub.s32 %v307, 2
    %vm309 = vcmp.gt.s32.totalorder 0, %v308
    %v310 = vsel %vm309, 0, %v308
    %v311 = vsub.s32 32, %v310
    %v312 = vshll.u32 %v303, %v310
    %v313 = vshrl.u32 %v295, %v311
    %v314 = vor.u32 %v312, %v313
    %v315 = vsub.s32 4294967266, %v310
    %v316 = vadd.s32 %v315, 127
    %v317 = vshll.u32 %v316, 23
    %v318 = vor.u32 4788187, %v317
    %v319 = vand.u32 2147483647, %v318
    %v321 = vcvt.s32.f32 %v314
    %v322 = vmul.f32 %v321, %v319
    %v323 = vxor.u32 %v322, 2147483648
    %v324 = vsel %vm241, %v323, %v322
    %v325 = vsub.s32 4, %v301
    %v326 = vsel %vm241, %v325, %v301
    %v327 = vsel %vm240, %v29, %v324
    %v328 = vsel %vm240, 0, %v326
    %v329 = vcosq.f32.pop %v327
    %v330 = vsinq.f32.pop %v327
    %vm331 = vweird.f32 %v29
    %v332 = vadd.s32 %v328, 3
    %v333 = vand.u32 %v332, 3
    %vm334 = vcmp.lt.s32.totalorder %v333, 2
    %vm335 = vcmp.eq.s32.totalorder %v333, 0
    %v336 = vxor.u32 %v330, 2147483648
    %v337 = vsel %vm335, %v329, %v336
    %vm338 = vcmp.eq.s32.totalorder %v333, 2
    %v339 = vxor.u32 %v329, 2147483648
    %v340 = vsel %vm338, %v339, %v330
    %v341 = vsel %vm334, %v337, %v340
    %v342 = vsel %vm331, nan, %v341
    %v343 = vand.u32 2147483647, %v30
    %vm344 = vcmp.le.f32.partialorder %v343, 0.7853982
    %vm345 = vcmp.lt.s32.totalorder %v30, 0
    %v346 = vand.u32 %v30, 2139095040
    %v347 = vshrl.u32 %v346, 23
    %v348 = vsub.s32 %v347, 127
    %v349 = vand.u32 2147483647, %v30
    %v350 = vand.u32 %v349, 8388607
    %v351 = vor.u32 %v350, 8388608
    %v352 = vsub.s32 0, %v351
    %v353 = vadd.s32 %v348, 1
    %vm354 = vcmp.gt.s32.totalorder %v353, 0
    %v355 = vsel %vm354, %v353, 0
    %v356 = vshrl.u32 %v355, 5
    %v357 = vand.u32 %v355, 31
    %v358 = vsub.s32 32, %v357
    %v359 = vshrl.u32 683565275, %v358
    %v360 = vshll.u32 683565275, %v357
    %v361 = vshrl.u32 2475754826, %v358
    %v362 = vor.u32 %v360, %v361
    %v363 = vshll.u32 2475754826, %v357
    %v364 = vshrl.u32 2131351028, %v358
    %v365 = vor.u32 %v363, %v364
    %v366 = vshll.u32 2131351028, %v357
    %v367 = vshrl.u32 2102212464, %v358
    %v368 = vor.u32 %v366, %v367
    %v369 = vshll.u32 2102212464, %v357
    %v370 = vshrl.u32 920167782, %v358
    %v371 = vor.u32 %v369, %v370
    %v372 = vshll.u32 920167782, %v357
    %v373 = vshrl.u32 1326507024, %v358
    %v374 = vor.u32 %v372, %v373
    %vm375 = vcmp.lt.s32.totalorder %v356, 1
    %vm376 = vcmp.lt.s32.totalorder %v356, 2
    %vm377 = vcmp.lt.s32.totalorder %v356, 3
    %vm378 = vcmp.lt.s32.totalorder %v356, 4
    %v379 = vsel %vm375, %v359, %v362
    %v380 = vsel %vm378, %v368, 2102212464
    %v381 = vsel %vm377, %v365, %v380
    %v382 = vsel %vm376, %v379, %v381
    %v383 = vsel %vm375, %v362, %v365
    %v384 = vsel %vm378, %v371, 920167782
    %v385 = vsel %vm377, %v368, %v384
    %v386 = vsel %vm376, %v383, %v385
    %v387 = vsel %vm375, %v365, %v368
    %v388 = vsel %vm378, %v374, 1326507024
    %v389 = vsel %vm377, %v371, %v388
    %v390 = vsel %vm376, %v387, %v389
    %v391 = vshll.u32 %v351, 8
    %v392 = vmul.u32.u64.compose %v391, %v390
    %v393 = vextract.low.u32 %v392
    %v394 = vextract.high.u32 %v392
    %v395 = vmul.u32.u64.compose %v391, %v386
    %v396 = vextract.low.u32 %v395
    %v397 = vextract.high.u32 %v395
    %v398 = vmul.u32 %v391, %v382
    %v399 = vadd.s32 %v394, %v396
    %vm400 = vc.u32 %v394, %v396
    %v401 = vadd.s32 %v397, 1
    %v402 = vsel %vm400, %v401, %v397
    %v403 = vadd.s32 %v398, %v402
    %v404 = vadd.s32 %v403, 536870912
    %v405 = vshrl.u32 %v404, 30
    %v406 = vshll.u32 %v405, 30
    %v407 = vsub.s32 %v403, %v406
    %vm408 = vcmp.lt.s32.totalorder %v407, 0
    %v409 = vsub.s32 0, %v407
    %v410 = vsel %vm408, %v409, %v407
    %v411 = vclz %v410
    %v412 = vsub.s32 %v411, 2
    %vm413 = vcmp.gt.s32.totalorder 0, %v412
    %v414 = vsel %vm413, 0, %v412
    %v415 = vsub.s32 32, %v414
    %v416 = vshll.u32 %v407, %v414
    %v417 = vshrl.u32 %v399, %v415
    %v418 = vor.u32 %v416, %v417
    %v419 = vsub.s32 4294967266, %v414
    %v420 = vadd.s32 %v419, 127
    %v421 = vshll.u32 %v420, 23
    %v422 = vor.u32 4788187, %v421
    %v423 = vand.u32 2147483647, %v422
    %v425 = vcvt.s32.f32 %v418
    %v426 = vmul.f32 %v425, %v423
    %v427 = vxor.u32 %v426, 2147483648
    %v428 = vsel %vm345, %v427, %v426
    %v429 = vsub.s32 4, %v405
    %v430 = vsel %vm345, %v429, %v405
    %v431 = vsel %vm344, %v30, %v428
    %v432 = vsel %vm344, 0, %v430
    %v433 = vcosq.f32.pop %v431
    %v434 = vsinq.f32.pop %v431
    %vm435 = vweird.f32 %v30
    %v436 = vadd.s32 %v432, 3
    %v437 = vand.u32 %v436, 3
    %vm438 = vcmp.lt.s32.totalorder %v437, 2
    %vm439 = vcmp.eq.s32.totalorder %v437, 0
    %v440 = vxor.u32 %v434, 2147483648
    %v441 = vsel %vm439, %v433, %v440
    %vm442 = vcmp.eq.s32.totalorder %v437, 2
    %v443 = vxor.u32 %v433, 2147483648
    %v444 = vsel %vm442, %v443, %v434
    %v445 = vsel %vm438, %v441, %v444
    %v446 = vsel %vm435, nan, %v445
    %v447 = vand.u32 2147483647, %v27
    %vm448 = vcmp.le.f32.partialorder %v447, 0.7853982
    %vm449 = vcmp.lt.s32.totalorder %v27, 0
    %v450 = vand.u32 %v27, 2139095040
    %v451 = vshrl.u32 %v450, 23
    %v452 = vsub.s32 %v451, 127
    %v453 = vand.u32 2147483647, %v27
    %v454 = vand.u32 %v453, 8388607
    %v455 = vor.u32 %v454, 8388608
    %v456 = vsub.s32 0, %v455
    %v457 = vadd.s32 %v452, 1
    %vm458 = vcmp.gt.s32.totalorder %v457, 0
    %v459 = vsel %vm458, %v457, 0
    %v460 = vshrl.u32 %v459, 5
    %v461 = vand.u32 %v459, 31
    %v462 = vsub.s32 32, %v461
    %v463 = vshrl.u32 683565275, %v462
    %v464 = vshll.u32 683565275, %v461
    %v465 = vshrl.u32 2475754826, %v462
    %v466 = vor.u32 %v464, %v465
    %v467 = vshll.u32 2475754826, %v461
    %v468 = vshrl.u32 2131351028, %v462
    %v469 = vor.u32 %v467, %v468
    %v470 = vshll.u32 2131351028, %v461
    %v471 = vshrl.u32 2102212464, %v462
    %v472 = vor.u32 %v470, %v471
    %v473 = vshll.u32 2102212464, %v461
    %v474 = vshrl.u32 920167782, %v462
    %v475 = vor.u32 %v473, %v474
    %v476 = vshll.u32 920167782, %v461
    %v477 = vshrl.u32 1326507024, %v462
    %v478 = vor.u32 %v476, %v477
    %vm479 = vcmp.lt.s32.totalorder %v460, 1
    %vm480 = vcmp.lt.s32.totalorder %v460, 2
    %vm481 = vcmp.lt.s32.totalorder %v460, 3
    %vm482 = vcmp.lt.s32.totalorder %v460, 4
    %v483 = vsel %vm479, %v463, %v466
    %v484 = vsel %vm482, %v472, 2102212464
    %v485 = vsel %vm481, %v469, %v484
    %v486 = vsel %vm480, %v483, %v485
    %v487 = vsel %vm479, %v466, %v469
    %v488 = vsel %vm482, %v475, 920167782
    %v489 = vsel %vm481, %v472, %v488
    %v490 = vsel %vm480, %v487, %v489
    %v491 = vsel %vm479, %v469, %v472
    %v492 = vsel %vm482, %v478, 1326507024
    %v493 = vsel %vm481, %v475, %v492
    %v494 = vsel %vm480, %v491, %v493
    %v495 = vshll.u32 %v455, 8
    %v496 = vmul.u32.u64.compose %v495, %v494
    %v497 = vextract.low.u32 %v496
    %v498 = vextract.high.u32 %v496
    %v499 = vmul.u32.u64.compose %v495, %v490
    %v500 = vextract.low.u32 %v499
    %v501 = vextract.high.u32 %v499
    %v502 = vmul.u32 %v495, %v486
    %v503 = vadd.s32 %v498, %v500
    %vm504 = vc.u32 %v498, %v500
    %v505 = vadd.s32 %v501, 1
    %v506 = vsel %vm504, %v505, %v501
    %v507 = vadd.s32 %v502, %v506
    %v508 = vadd.s32 %v507, 536870912
    %v509 = vshrl.u32 %v508, 30
    %v510 = vshll.u32 %v509, 30
    %v511 = vsub.s32 %v507, %v510
    %vm512 = vcmp.lt.s32.totalorder %v511, 0
    %v513 = vsub.s32 0, %v511
    %v514 = vsel %vm512, %v513, %v511
    %v515 = vclz %v514
    %v516 = vsub.s32 %v515, 2
    %vm517 = vcmp.gt.s32.totalorder 0, %v516
    %v518 = vsel %vm517, 0, %v516
    %v519 = vsub.s32 32, %v518
    %v520 = vshll.u32 %v511, %v518
    %v521 = vshrl.u32 %v503, %v519
    %v522 = vor.u32 %v520, %v521
    %v523 = vsub.s32 4294967266, %v518
    %v524 = vadd.s32 %v523, 127
    %v525 = vshll.u32 %v524, 23
    %v526 = vor.u32 4788187, %v525
    %v527 = vand.u32 2147483647, %v526
    %v529 = vcvt.s32.f32 %v522
    %v530 = vmul.f32 %v529, %v527
    %v531 = vxor.u32 %v530, 2147483648
    %v532 = vsel %vm449, %v531, %v530
    %v533 = vsub.s32 4, %v509
    %v534 = vsel %vm449, %v533, %v509
    %v535 = vsel %vm448, %v27, %v532
    %v536 = vsel %vm448, 0, %v534
    %v537 = vcosq.f32.pop %v535
    %v538 = vsinq.f32.pop %v535
    %vm539 = vweird.f32 %v27
    %v540 = vand.u32 %v536, 3
    %vm541 = vcmp.lt.s32.totalorder %v540, 2
    %vm542 = vcmp.eq.s32.totalorder %v540, 0
    %v543 = vxor.u32 %v538, 2147483648
    %v544 = vsel %vm542, %v537, %v543
    %vm545 = vcmp.eq.s32.totalorder %v540, 2
    %v546 = vxor.u32 %v537, 2147483648
    %v547 = vsel %vm545, %v546, %v538
    %v548 = vsel %vm541, %v544, %v547
    %v549 = vsel %vm539, nan, %v548
    %v550 = vand.u32 2147483647, %v28
    %vm551 = vcmp.le.f32.partialorder %v550, 0.7853982
    %vm552 = vcmp.lt.s32.totalorder %v28, 0
    %v553 = vand.u32 %v28, 2139095040
    %v554 = vshrl.u32 %v553, 23
    %v555 = vsub.s32 %v554, 127
    %v556 = vand.u32 2147483647, %v28
    %v557 = vand.u32 %v556, 8388607
    %v558 = vor.u32 %v557, 8388608
    %v559 = vsub.s32 0, %v558
    %v560 = vadd.s32 %v555, 1
    %vm561 = vcmp.gt.s32.totalorder %v560, 0
    %v562 = vsel %vm561, %v560, 0
    %v563 = vshrl.u32 %v562, 5
    %v564 = vand.u32 %v562, 31
    %v565 = vsub.s32 32, %v564
    %v566 = vshrl.u32 683565275, %v565
    %v567 = vshll.u32 683565275, %v564
    %v568 = vshrl.u32 2475754826, %v565
    %v569 = vor.u32 %v567, %v568
    %v570 = vshll.u32 2475754826, %v564
    %v571 = vshrl.u32 2131351028, %v565
    %v572 = vor.u32 %v570, %v571
    %v573 = vshll.u32 2131351028, %v564
    %v574 = vshrl.u32 2102212464, %v565
    %v575 = vor.u32 %v573, %v574
    %v576 = vshll.u32 2102212464, %v564
    %v577 = vshrl.u32 920167782, %v565
    %v578 = vor.u32 %v576, %v577
    %v579 = vshll.u32 920167782, %v564
    %v580 = vshrl.u32 1326507024, %v565
    %v581 = vor.u32 %v579, %v580
    %vm582 = vcmp.lt.s32.totalorder %v563, 1
    %vm583 = vcmp.lt.s32.totalorder %v563, 2
    %vm584 = vcmp.lt.s32.totalorder %v563, 3
    %vm585 = vcmp.lt.s32.totalorder %v563, 4
    %v586 = vsel %vm582, %v566, %v569
    %v587 = vsel %vm585, %v575, 2102212464
    %v588 = vsel %vm584, %v572, %v587
    %v589 = vsel %vm583, %v586, %v588
    %v590 = vsel %vm582, %v569, %v572
    %v591 = vsel %vm585, %v578, 920167782
    %v592 = vsel %vm584, %v575, %v591
    %v593 = vsel %vm583, %v590, %v592
    %v594 = vsel %vm582, %v572, %v575
    %v595 = vsel %vm585, %v581, 1326507024
    %v596 = vsel %vm584, %v578, %v595
    %v597 = vsel %vm583, %v594, %v596
    %v598 = vshll.u32 %v558, 8
    %v599 = vmul.u32.u64.compose %v598, %v597
    %v600 = vextract.low.u32 %v599
    %v601 = vextract.high.u32 %v599
    %v602 = vmul.u32.u64.compose %v598, %v593
    %v603 = vextract.low.u32 %v602
    %v604 = vextract.high.u32 %v602
    %v605 = vmul.u32 %v598, %v589
    %v606 = vadd.s32 %v601, %v603
    %vm607 = vc.u32 %v601, %v603
    %v608 = vadd.s32 %v604, 1
    %v609 = vsel %vm607, %v608, %v604
    %v610 = vadd.s32 %v605, %v609
    %v611 = vadd.s32 %v610, 536870912
    %v612 = vshrl.u32 %v611, 30
    %v613 = vshll.u32 %v612, 30
    %v614 = vsub.s32 %v610, %v613
    %vm615 = vcmp.lt.s32.totalorder %v614, 0
    %v616 = vsub.s32 0, %v614
    %v617 = vsel %vm615, %v616, %v614
    %v618 = vclz %v617
    %v619 = vsub.s32 %v618, 2
    %vm620 = vcmp.gt.s32.totalorder 0, %v619
    %v621 = vsel %vm620, 0, %v619
    %v622 = vsub.s32 32, %v621
    %v623 = vshll.u32 %v614, %v621
    %v624 = vshrl.u32 %v606, %v622
    %v625 = vor.u32 %v623, %v624
    %v626 = vsub.s32 4294967266, %v621
    %v627 = vadd.s32 %v626, 127
    %v628 = vshll.u32 %v627, 23
    %v629 = vor.u32 4788187, %v628
    %v630 = vand.u32 2147483647, %v629
    %v632 = vcvt.s32.f32 %v625
    %v633 = vmul.f32 %v632, %v630
    %v634 = vxor.u32 %v633, 2147483648
    %v635 = vsel %vm552, %v634, %v633
    %v636 = vsub.s32 4, %v612
    %v637 = vsel %vm552, %v636, %v612
    %v638 = vsel %vm551, %v28, %v635
    %v639 = vsel %vm551, 0, %v637
    %v640 = vcosq.f32.pop %v638
    %v641 = vsinq.f32.pop %v638
    %vm642 = vweird.f32 %v28
    %v643 = vand.u32 %v639, 3
    %vm644 = vcmp.lt.s32.totalorder %v643, 2
    %vm645 = vcmp.eq.s32.totalorder %v643, 0
    %v646 = vxor.u32 %v641, 2147483648
    %v647 = vsel %vm645, %v640, %v646
    %vm648 = vcmp.eq.s32.totalorder %v643, 2
    %v649 = vxor.u32 %v640, 2147483648
    %v650 = vsel %vm648, %v649, %v641
    %v651 = vsel %vm644, %v647, %v650
    %v652 = vsel %vm642, nan, %v651
    %v653 = vand.u32 2147483647, %v29
    %vm654 = vcmp.le.f32.partialorder %v653, 0.7853982
    %vm655 = vcmp.lt.s32.totalorder %v29, 0
    %v656 = vand.u32 %v29, 2139095040
    %v657 = vshrl.u32 %v656, 23
    %v658 = vsub.s32 %v657, 127
    %v659 = vand.u32 2147483647, %v29
    %v660 = vand.u32 %v659, 8388607
    %v661 = vor.u32 %v660, 8388608
    %v662 = vsub.s32 0, %v661
    %v663 = vadd.s32 %v658, 1
    %vm664 = vcmp.gt.s32.totalorder %v663, 0
    %v665 = vsel %vm664, %v663, 0
    %v666 = vshrl.u32 %v665, 5
    %v667 = vand.u32 %v665, 31
    %v668 = vsub.s32 32, %v667
    %v669 = vshrl.u32 683565275, %v668
    %v670 = vshll.u32 683565275, %v667
    %v671 = vshrl.u32 2475754826, %v668
    %v672 = vor.u32 %v670, %v671
    %v673 = vshll.u32 2475754826, %v667
    %v674 = vshrl.u32 2131351028, %v668
    %v675 = vor.u32 %v673, %v674
    %v676 = vshll.u32 2131351028, %v667
    %v677 = vshrl.u32 2102212464, %v668
    %v678 = vor.u32 %v676, %v677
    %v679 = vshll.u32 2102212464, %v667
    %v680 = vshrl.u32 920167782, %v668
    %v681 = vor.u32 %v679, %v680
    %v682 = vshll.u32 920167782, %v667
    %v683 = vshrl.u32 1326507024, %v668
    %v684 = vor.u32 %v682, %v683
    %vm685 = vcmp.lt.s32.totalorder %v666, 1
    %vm686 = vcmp.lt.s32.totalorder %v666, 2
    %vm687 = vcmp.lt.s32.totalorder %v666, 3
    %vm688 = vcmp.lt.s32.totalorder %v666, 4
    %v689 = vsel %vm685, %v669, %v672
    %v690 = vsel %vm688, %v678, 2102212464
    %v691 = vsel %vm687, %v675, %v690
    %v692 = vsel %vm686, %v689, %v691
    %v693 = vsel %vm685, %v672, %v675
    %v694 = vsel %vm688, %v681, 920167782
    %v695 = vsel %vm687, %v678, %v694
    %v696 = vsel %vm686, %v693, %v695
    %v697 = vsel %vm685, %v675, %v678
    %v698 = vsel %vm688, %v684, 1326507024
    %v699 = vsel %vm687, %v681, %v698
    %v700 = vsel %vm686, %v697, %v699
    %v701 = vshll.u32 %v661, 8
    %v702 = vmul.u32.u64.compose %v701, %v700
    %v703 = vextract.low.u32 %v702
    %v704 = vextract.high.u32 %v702
    %v705 = vmul.u32.u64.compose %v701, %v696
    %v706 = vextract.low.u32 %v705
    %v707 = vextract.high.u32 %v705
    %v708 = vmul.u32 %v701, %v692
    %v709 = vadd.s32 %v704, %v706
    %vm710 = vc.u32 %v704, %v706
    %v711 = vadd.s32 %v707, 1
    %v712 = vsel %vm710, %v711, %v707
    %v713 = vadd.s32 %v708, %v712
    %v714 = vadd.s32 %v713, 536870912
    %v715 = vshrl.u32 %v714, 30
    %v716 = vshll.u32 %v715, 30
    %v717 = vsub.s32 %v713, %v716
    %vm718 = vcmp.lt.s32.totalorder %v717, 0
    %v719 = vsub.s32 0, %v717
    %v720 = vsel %vm718, %v719, %v717
    %v721 = vclz %v720
    %v722 = vsub.s32 %v721, 2
    %vm723 = vcmp.gt.s32.totalorder 0, %v722
    %v724 = vsel %vm723, 0, %v722
    %v725 = vsub.s32 32, %v724
    %v726 = vshll.u32 %v717, %v724
    %v727 = vshrl.u32 %v709, %v725
    %v728 = vor.u32 %v726, %v727
    %v729 = vsub.s32 4294967266, %v724
    %v730 = vadd.s32 %v729, 127
    %v731 = vshll.u32 %v730, 23
    %v732 = vor.u32 4788187, %v731
    %v733 = vand.u32 2147483647, %v732
    %v735 = vcvt.s32.f32 %v728
    %v736 = vmul.f32 %v735, %v733
    %v737 = vxor.u32 %v736, 2147483648
    %v738 = vsel %vm655, %v737, %v736
    %v739 = vsub.s32 4, %v715
    %v740 = vsel %vm655, %v739, %v715
    %v741 = vsel %vm654, %v29, %v738
    %v742 = vsel %vm654, 0, %v740
    %v743 = vcosq.f32.pop %v741
    %v744 = vsinq.f32.pop %v741
    %vm745 = vweird.f32 %v29
    %v746 = vand.u32 %v742, 3
    %vm747 = vcmp.lt.s32.totalorder %v746, 2
    %vm748 = vcmp.eq.s32.totalorder %v746, 0
    %v749 = vxor.u32 %v744, 2147483648
    %v750 = vsel %vm748, %v743, %v749
    %vm751 = vcmp.eq.s32.totalorder %v746, 2
    %v752 = vxor.u32 %v743, 2147483648
    %v753 = vsel %vm751, %v752, %v744
    %v754 = vsel %vm747, %v750, %v753
    %v755 = vsel %vm745, nan, %v754
    %v756 = vand.u32 2147483647, %v30
    %vm757 = vcmp.le.f32.partialorder %v756, 0.7853982
    %vm758 = vcmp.lt.s32.totalorder %v30, 0
    %v759 = vand.u32 %v30, 2139095040
    %v760 = vshrl.u32 %v759, 23
    %v761 = vsub.s32 %v760, 127
    %v762 = vand.u32 2147483647, %v30
    %v763 = vand.u32 %v762, 8388607
    %v764 = vor.u32 %v763, 8388608
    %v765 = vsub.s32 0, %v764
    %v766 = vadd.s32 %v761, 1
    %vm767 = vcmp.gt.s32.totalorder %v766, 0
    %v768 = vsel %vm767, %v766, 0
    %v769 = vshrl.u32 %v768, 5
    %v770 = vand.u32 %v768, 31
    %v771 = vsub.s32 32, %v770
    %v772 = vshrl.u32 683565275, %v771
    %v773 = vshll.u32 683565275, %v770
    %v774 = vshrl.u32 2475754826, %v771
    %v775 = vor.u32 %v773, %v774
    %v776 = vshll.u32 2475754826, %v770
    %v777 = vshrl.u32 2131351028, %v771
    %v778 = vor.u32 %v776, %v777
    %v779 = vshll.u32 2131351028, %v770
    %v780 = vshrl.u32 2102212464, %v771
    %v781 = vor.u32 %v779, %v780
    %v782 = vshll.u32 2102212464, %v770
    %v783 = vshrl.u32 920167782, %v771
    %v784 = vor.u32 %v782, %v783
    %v785 = vshll.u32 920167782, %v770
    %v786 = vshrl.u32 1326507024, %v771
    %v787 = vor.u32 %v785, %v786
    %vm788 = vcmp.lt.s32.totalorder %v769, 1
    %vm789 = vcmp.lt.s32.totalorder %v769, 2
    %vm790 = vcmp.lt.s32.totalorder %v769, 3
    %vm791 = vcmp.lt.s32.totalorder %v769, 4
    %v792 = vsel %vm788, %v772, %v775
    %v793 = vsel %vm791, %v781, 2102212464
    %v794 = vsel %vm790, %v778, %v793
    %v795 = vsel %vm789, %v792, %v794
    %v796 = vsel %vm788, %v775, %v778
    %v797 = vsel %vm791, %v784, 920167782
    %v798 = vsel %vm790, %v781, %v797
    %v799 = vsel %vm789, %v796, %v798
    %v800 = vsel %vm788, %v778, %v781
    %v801 = vsel %vm791, %v787, 1326507024
    %v802 = vsel %vm790, %v784, %v801
    %v803 = vsel %vm789, %v800, %v802
    %v804 = vshll.u32 %v764, 8
    %v805 = vmul.u32.u64.compose %v804, %v803
    %v806 = vextract.low.u32 %v805
    %v807 = vextract.high.u32 %v805
    %v808 = vmul.u32.u64.compose %v804, %v799
    %v809 = vextract.low.u32 %v808
    %v810 = vextract.high.u32 %v808
    %v811 = vmul.u32 %v804, %v795
    %v812 = vadd.s32 %v807, %v809
    %vm813 = vc.u32 %v807, %v809
    %v814 = vadd.s32 %v810, 1
    %v815 = vsel %vm813, %v814, %v810
    %v816 = vadd.s32 %v811, %v815
    %v817 = vadd.s32 %v816, 536870912
    %v818 = vshrl.u32 %v817, 30
    %v819 = vshll.u32 %v818, 30
    %v820 = vsub.s32 %v816, %v819
    %vm821 = vcmp.lt.s32.totalorder %v820, 0
    %v822 = vsub.s32 0, %v820
    %v823 = vsel %vm821, %v822, %v820
    %v824 = vclz %v823
    %v825 = vsub.s32 %v824, 2
    %vm826 = vcmp.gt.s32.totalorder 0, %v825
    %v827 = vsel %vm826, 0, %v825
    %v828 = vsub.s32 32, %v827
    %v829 = vshll.u32 %v820, %v827
    %v830 = vshrl.u32 %v812, %v828
    %v831 = vor.u32 %v829, %v830
    %v832 = vsub.s32 4294967266, %v827
    %v833 = vadd.s32 %v832, 127
    %v834 = vshll.u32 %v833, 23
    %v835 = vor.u32 4788187, %v834
    %v836 = vand.u32 2147483647, %v835
    %v838 = vcvt.s32.f32 %v831
    %v839 = vmul.f32 %v838, %v836
    %v840 = vxor.u32 %v839, 2147483648
    %v841 = vsel %vm758, %v840, %v839
    %v842 = vsub.s32 4, %v818
    %v843 = vsel %vm758, %v842, %v818
    %v844 = vsel %vm757, %v30, %v841
    %v845 = vsel %vm757, 0, %v843
    %v846 = vcosq.f32.pop %v844
    %v847 = vsinq.f32.pop %v844
    %vm848 = vweird.f32 %v30
    %v849 = vand.u32 %v845, 3
    %vm850 = vcmp.lt.s32.totalorder %v849, 2
    %vm851 = vcmp.eq.s32.totalorder %v849, 0
    %v852 = vxor.u32 %v847, 2147483648
    %v853 = vsel %vm851, %v846, %v852
    %vm854 = vcmp.eq.s32.totalorder %v849, 2
    %v855 = vxor.u32 %v846, 2147483648
    %v856 = vsel %vm854, %v855, %v847
    %v857 = vsel %vm850, %v853, %v856
    %v858 = vsel %vm848, nan, %v857
    %v859 = vmul.f32 %v134, 2.0
    %v860 = vmul.f32 %v238, 2.0
    %v861 = vmul.f32 %v342, 2.0
    %v862 = vmul.f32 %v446, 2.0
    %v863 = vmul.f32 %v859, %v549
    %v864 = vmul.f32 %v860, %v652
    %v865 = vmul.f32 %v861, %v755
    %v866 = vmul.f32 %v862, %v858
    %v867 = vmul.f32 %v859, %v134
    %v868 = vmul.f32 %v860, %v238
    %v869 = vmul.f32 %v861, %v342
    %v870 = vmul.f32 %v862, %v446
    %v871 = vsub.f32 1.0, %v867
    %v872 = vsub.f32 1.0, %v868
    %v873 = vsub.f32 1.0, %v869
    %v874 = vsub.f32 1.0, %v870
    %879 = vrot.lane.b32.xlu0 %v863, 32
    %v880 = vpop.permute.xlu0 %879
    %881 = vrot.lane.b32.xlu0 %v864, 32
    %v882 = vpop.permute.xlu0 %881
    %883 = vrot.lane.b32.xlu0 %v865, 32
    %v884 = vpop.permute.xlu0 %883
    %885 = vrot.lane.b32.xlu0 %v866, 32
    %v886 = vpop.permute.xlu0 %885
    %895 = vrot.lane.b32.xlu0 %v871, 64
    %v896 = vpop.permute.xlu0 %895
    %897 = vrot.lane.b32.xlu0 %v872, 64
    %v898 = vpop.permute.xlu0 %897
    %899 = vrot.lane.b32.xlu0 %v873, 64
    %v900 = vpop.permute.xlu0 %899
    %901 = vrot.lane.b32.xlu0 %v874, 64
    %v902 = vpop.permute.xlu0 %901
    %911 = vrot.lane.b32.xlu0 %v134, 96
    %v912 = vpop.permute.xlu0 %911
    %913 = vrot.lane.b32.xlu0 %v238, 96
    %v914 = vpop.permute.xlu0 %913
    %915 = vrot.lane.b32.xlu0 %v342, 96
    %v916 = vpop.permute.xlu0 %915
    %917 = vrot.lane.b32.xlu0 %v446, 96
    %v918 = vpop.permute.xlu0 %917
    %vm923 = vcmask 261120
    %v924 = vsel %vm923, %v23, %v880
    %v925 = vsel %vm923, %v24, %v882
    %v926 = vsel %vm923, %v25, %v884
    %v927 = vsel %vm923, %v26, %v886
    %vm928 = vcmask 523264
    %v929 = vsel %vm928, %v924, %v896
    %v930 = vsel %vm928, %v925, %v898
    %v931 = vsel %vm928, %v926, %v900
    %v932 = vsel %vm928, %v927, %v902
    %vm933 = vcmask 785408
    %v934 = vsel %vm933, %v929, %v912
    %v935 = vsel %vm933, %v930, %v914
    %v936 = vsel %vm933, %v931, %v916
    %v937 = vsel %vm933, %v932, %v918
    %938 = vst [vmem:[#allocation5] sm:$0xff] %v934
    %939 = vst.msk [vmem:[#allocation5 + $0x8] sm:$0xff] %vm923, %v549
    %940 = vst [vmem:[#allocation5 + $0x10] sm:$0xff] %v935
    %941 = vst.msk [vmem:[#allocation5 + $0x18] sm:$0xff] %vm923, %v652
    %942 = vst [vmem:[#allocation5 + $0x20] sm:$0xff] %v936
    %943 = vst.msk [vmem:[#allocation5 + $0x28] sm:$0xff] %vm923, %v755
    %944 = vst [vmem:[#allocation5 + $0x30] sm:$0xff] %v937
    %945 = vst.msk [vmem:[#allocation5 + $0x38] sm:$0xff] %vm923, %v858
    // Predicated region
    $region10: #{tpu_custom_call.1} parent=1 // pred_check
      _
    $region11: #{tpu_custom_call.1} parent=1 // pred_check_branch
      %947 = sbr.rel (0) target = $region13
    $region12: #{tpu_custom_call.1} parent=1 // pred_region
      %s949 = ssub.s32 1024, 1024
      %950 = vsyncadd [#allocation4], %s949
      %s951 = sshll.u32 [#allocation5], 4
      %s952 = int_to_ptr.vmem [resolvable:$true] %s951
      %957 = dma.vmem_to_hbm [thread:$0]  %s952, 1024, %s1, [#allocation4], 256, 256, 16
    $region13: #{tpu_custom_call.1} parent=1 // pred_fallthru
      _
    // Predicated region
    $region14: #{tpu_custom_call.1} parent=1 // pred_check
      _
    $region15: #{tpu_custom_call.1} parent=1 // pred_check_branch
      %959 = sbr.rel (0) target = $region17
    $region16: #{tpu_custom_call.1} parent=1 // pred_region
      %960 = dma.done [#allocation4], 1024
    $region17: #{tpu_custom_call.1} parent=1 // pred_fallthru
      _
    %961 = vsyncpa [#allocation3], 1
    %962 = vsyncpa [#allocation4], 1

</llo_original>
